<compile_context>
chip_gen: v7x
topology: tpu7x:2x2x1
jax: 0.10.0
libtpu: 0.0.40
codegen_flags: <defaults>
</compile_context>

<pallas_src>
import functools

import jax
import jax.numpy as jnp
from jax.experimental import pallas as pl
from jax.experimental.pallas import tpu as pltpu


def _mlp_kernel(xT_ref, w1_ref, b1_ref, w2_ref, b2_ref, o_ref, *, precision):
    # xT: (F, TB)   w1: (H, F)   b1: (H, 1)   w2: (H, 1)   b2: (1, 1)
    # Layer 1 on the MXU: (H, F) @ (F, TB) -> (H, TB), f32 accumulation.
    hT = jnp.dot(w1_ref[...], xT_ref[...],
                 preferred_element_type=jnp.float32, precision=precision)
    hT = jnp.maximum(hT + b1_ref[...], 0.0)                 # bias + ReLU (VPU)
    # Layer 2 (8 -> 1) on the VPU/XLU: broadcast multiply + sublane reduce.
    yT = jnp.sum(hT * w2_ref[...], axis=0, keepdims=True) + b2_ref[...]
    o_ref[...] = yT.astype(o_ref.dtype)


def mlp_forward(x, w1, b1, w2, b2, *, block_b=2048, compute_dtype=jnp.bfloat16):
    """Forward of Linear(F->H) -> ReLU -> Linear(H->1).

    x : (B, F)             -- same layout as the PyTorch module input
    w1: (H, F), b1: (H,)   -- PyTorch nn.Linear (out, in) layout
    w2: (1, H), b2: (1,)
    Returns (B, 1) in x.dtype.
    """
    B, F = x.shape
    H = w1.shape[0]
    out_dtype = x.dtype
    cd = x.dtype if compute_dtype is None else compute_dtype

    # Batch tile: multiple of 128 (lane width); pad B to a whole number of tiles.
    tb = min(block_b, ((B + 127) // 128) * 128)
    padded_b = ((B + tb - 1) // tb) * tb
    grid = (padded_b // tb,)

    # Lane-dense layout: batch on the last axis.  The cast + transpose + pad
    # fuse into a single XLA copy of x (bf16 when compute_dtype is bf16).
    xT = x.T.astype(cd)                                         # (F, B)
    if padded_b != B:
        xT = jnp.pad(xT, ((0, 0), (0, padded_b - B)))           # (F, padded_b)
    w1c = w1.astype(cd)                                         # (H, F)
    b1c = b1.reshape(H, 1).astype(jnp.float32)                  # (H, 1)
    w2c = w2.reshape(1, H).T.astype(jnp.float32)                # (H, 1)
    b2c = b2.reshape(1, 1).astype(jnp.float32)                  # (1, 1)

    # Full f32 precision on the MXU when inputs are f32; bf16 path uses the
    # native bf16 MXU with f32 accumulation.
    precision = (jax.lax.Precision.HIGHEST
                 if jnp.dtype(cd) == jnp.dtype(jnp.float32) else None)
    kernel = functools.partial(_mlp_kernel, precision=precision)

    def const(a):  # constant-index full block -> stays resident in VMEM
        return pl.BlockSpec(a.shape, lambda i, _nd=a.ndim: (0,) * _nd)

    yT = pl.pallas_call(
        kernel,
        out_shape=jax.ShapeDtypeStruct((1, padded_b), out_dtype),
        grid=grid,
        in_specs=[
            pl.BlockSpec((F, tb), lambda i: (0, i)),   # x tile, lane-dense
            const(w1c), const(b1c), const(w2c), const(b2c),
        ],
        out_specs=pl.BlockSpec((1, tb), lambda i: (0, i)),
        compiler_params=pltpu.CompilerParams(
            dimension_semantics=("parallel",),         # megacore on v7x
            vmem_limit_bytes=32 * 1024 * 1024,         # safe on v5e/v6e/v7x
        ),
    )(xT, w1c, b1c, w2c, b2c)

    if padded_b != B:
        yT = yT[:, :B]
    return yT.T                                        # (B, 1), free reshape


def init_params(key, n_features=13, hidden=8, out_features=1, dtype=jnp.float32):
    # Mirrors nn.Linear's uniform(-1/sqrt(fan_in), 1/sqrt(fan_in)) init,
    # weights stored in PyTorch (out_features, in_features) layout.
    k1, k2, k3, k4 = jax.random.split(key, 4)
    bound1 = 1.0 / (n_features ** 0.5)
    bound2 = 1.0 / (hidden ** 0.5)
    w1 = jax.random.uniform(k1, (hidden, n_features), dtype, -bound1, bound1)
    b1 = jax.random.uniform(k2, (hidden,), dtype, -bound1, bound1)
    w2 = jax.random.uniform(k3, (out_features, hidden), dtype, -bound2, bound2)
    b2 = jax.random.uniform(k4, (out_features,), dtype, -bound2, bound2)
    return w1, b1, w2, b2


if __name__ == "__main__":
    key = jax.random.PRNGKey(0)
    kx, kp = jax.random.split(key)

    batch, n_features = 32, 13
    x = jax.random.normal(kx, (batch, n_features), jnp.float32)
    w1, b1, w2, b2 = init_params(kp, n_features=n_features)

    # Reference (same math as the PyTorch module), computed at full f32.
    hi = jax.lax.Precision.HIGHEST
    ref = jnp.maximum(jnp.dot(x, w1.T, precision=hi) + b1, 0.0)
    ref = jnp.dot(ref, w2.T, precision=hi) + b2

    # f32 path: matches the reference tightly.
    out_f32 = jax.block_until_ready(
        mlp_forward(x, w1, b1, w2, b2, compute_dtype=jnp.float32))
    assert out_f32.shape == (batch, 1)
    assert jnp.allclose(out_f32, ref, atol=1e-4, rtol=1e-4)

    # bf16-input path (halves HBM traffic, f32 accumulation): looser tolerance.
    out_bf16 = jax.block_until_ready(
        mlp_forward(x, w1, b1, w2, b2, compute_dtype=jnp.bfloat16))
    assert out_bf16.shape == (batch, 1)
    assert jnp.allclose(out_bf16, ref, atol=5e-2, rtol=5e-2)

    print("KERNEL_OK")
</pallas_src>

<mosaic_0001>
module attributes {stable_mosaic.version = 11 : i64} {
  func.func @_mlp_kernel(%arg0: i32, %arg1: memref<13x128xf32, #tpu.memory_space<vmem>>, %arg2: memref<8x13xf32, #tpu.memory_space<vmem>>, %arg3: memref<8x1xf32, #tpu.memory_space<vmem>>, %arg4: memref<8x1xf32, #tpu.memory_space<vmem>>, %arg5: memref<1x1xf32, #tpu.memory_space<vmem>>, %arg6: memref<1x128xf32, #tpu.memory_space<vmem>>) attributes {dimension_semantics = [#tpu.dimension_semantics<parallel>], iteration_bounds = array<i64: 1>, scalar_prefetch = 0 : i64, scratch_operands = 0 : i64, tpu.core_type = #tpu.core_type<tc>, window_params = [{transform_indices = @transform_0, window_bounds = array<i64: 13, 128>}, {pipeline_mode = #tpu.pipeline_mode<synchronous>, transform_indices = @transform_1, window_bounds = array<i64: 8, 13>}, {pipeline_mode = #tpu.pipeline_mode<synchronous>, transform_indices = @transform_2, window_bounds = array<i64: 8, 1>}, {pipeline_mode = #tpu.pipeline_mode<synchronous>, transform_indices = @transform_3, window_bounds = array<i64: 8, 1>}, {pipeline_mode = #tpu.pipeline_mode<synchronous>, transform_indices = @transform_4, window_bounds = array<i64: 1, 1>}, {transform_indices = @transform_5, window_bounds = array<i64: 1, 128>}]} {
    %c0 = arith.constant 0 : index
    %c0_0 = arith.constant 0 : index
    %0 = vector.load %arg2[%c0, %c0_0] : memref<8x13xf32, #tpu.memory_space<vmem>>, vector<8x13xf32>
    %c0_1 = arith.constant 0 : index
    %c0_2 = arith.constant 0 : index
    %1 = vector.load %arg1[%c0_1, %c0_2] : memref<13x128xf32, #tpu.memory_space<vmem>>, vector<13x128xf32>
    %cst = arith.constant dense<0.000000e+00> : vector<8x128xf32>
    %2 = tpu.matmul %0, %1, %cst {dimension_numbers = #tpu.dot_dimension_numbers<[1], [0], [0], [1], [0, 0, 1, 1], [], []>, precision = #tpu.contract_precision<fp32>} : vector<8x13xf32>, vector<13x128xf32>, vector<8x128xf32> -> vector<8x128xf32>
    %c0_3 = arith.constant 0 : index
    %c0_4 = arith.constant 0 : index
    %3 = vector.load %arg3[%c0_3, %c0_4] : memref<8x1xf32, #tpu.memory_space<vmem>>, vector<8x1xf32>
    %4 = vector.broadcast %3 : vector<8x1xf32> to vector<8x128xf32>
    %5 = arith.addf %2, %4 : vector<8x128xf32>
    %cst_5 = arith.constant 0.000000e+00 : f32
    %6 = vector.broadcast %cst_5 : f32 to vector<8x128xf32>
    %7 = arith.maximumf %5, %6 : vector<8x128xf32>
    %c0_6 = arith.constant 0 : index
    %c0_7 = arith.constant 0 : index
    %8 = vector.load %arg4[%c0_6, %c0_7] : memref<8x1xf32, #tpu.memory_space<vmem>>, vector<8x1xf32>
    %9 = vector.broadcast %8 : vector<8x1xf32> to vector<8x128xf32>
    %10 = arith.mulf %7, %9 : vector<8x128xf32>
    %cst_8 = arith.constant dense<0.000000e+00> : vector<128xf32>
    %11 = vector.multi_reduction <add>, %10, %cst_8 [0] : vector<8x128xf32> to vector<128xf32>
    %12 = vector.shape_cast %11 : vector<128xf32> to vector<1x128xf32>
    %c0_9 = arith.constant 0 : index
    %c0_10 = arith.constant 0 : index
    %13 = vector.load %arg5[%c0_9, %c0_10] : memref<1x1xf32, #tpu.memory_space<vmem>>, vector<1x1xf32>
    %14 = vector.broadcast %13 : vector<1x1xf32> to vector<1x128xf32>
    %15 = arith.addf %12, %14 : vector<1x128xf32>
    %c0_11 = arith.constant 0 : index
    %c0_12 = arith.constant 0 : index
    %16 = vector.load %arg6[%c0_11, %c0_12] : memref<1x128xf32, #tpu.memory_space<vmem>>, vector<1x128xf32>
    tpu.vector_store %arg6[%c0_11, %c0_12], %15 {strides = array<i32>} : memref<1x128xf32, #tpu.memory_space<vmem>>, vector<1x128xf32>,
    return
  }
  func.func @transform_0(%arg0: i32) -> (i32, i32) {
    %c0_i32 = arith.constant 0 : i32
    %c0_i32_0 = arith.constant 0 : i32
    return %c0_i32, %arg0 : i32, i32
  }
  func.func @transform_1(%arg0: i32) -> (i32, i32) {
    %c0_i32 = arith.constant 0 : i32
    %c0_i32_0 = arith.constant 0 : i32
    %c0_i32_1 = arith.constant 0 : i32
    return %c0_i32, %c0_i32_0 : i32, i32
  }
  func.func @transform_2(%arg0: i32) -> (i32, i32) {
    %c0_i32 = arith.constant 0 : i32
    %c0_i32_0 = arith.constant 0 : i32
    %c0_i32_1 = arith.constant 0 : i32
    return %c0_i32, %c0_i32_0 : i32, i32
  }
  func.func @transform_3(%arg0: i32) -> (i32, i32) {
    %c0_i32 = arith.constant 0 : i32
    %c0_i32_0 = arith.constant 0 : i32
    %c0_i32_1 = arith.constant 0 : i32
    return %c0_i32, %c0_i32_0 : i32, i32
  }
  func.func @transform_4(%arg0: i32) -> (i32, i32) {
    %c0_i32 = arith.constant 0 : i32
    %c0_i32_0 = arith.constant 0 : i32
    %c0_i32_1 = arith.constant 0 : i32
    return %c0_i32, %c0_i32_0 : i32, i32
  }
  func.func @transform_5(%arg0: i32) -> (i32, i32) {
    %c0_i32 = arith.constant 0 : i32
    %c0_i32_0 = arith.constant 0 : i32
    return %c0_i32, %arg0 : i32, i32
  }
}

</mosaic_0001>

<llo_original>
// kernel: tpu_custom_call.1
$region0: #{tpu_custom_call.1}
  #allocation0 [shape = 'u32[]', space=smem, size = 0x4, offset = 0x4, fixed_abs, tag = 'smem constant byte address 0x4 - core index']
  #allocation1 [shape = 'u32[144,128]{1,0:T(1,128)}', space=vmem, size = 0x12000, scoped, tag = 'internal scratch']
  #allocation2 [shape = 'f32[1,1]{1,0:T(1,128)S(1)}', space=vmem, size = 0x200, scoped, tag = 'scoped memory for tpu_custom_call.1']
  %s0 = inlined_call_operand.vmem [shape: f32[13,128], index: 0, kind: input, shape index: {}]
  %s1 = inlined_call_operand.vmem [shape: f32[8,13], index: 1, kind: input, shape index: {}]
  %s2 = inlined_call_operand.vmem [shape: f32[8,1], index: 2, kind: input, shape index: {}]
  %s3 = inlined_call_operand.vmem [shape: f32[8,1], index: 3, kind: input, shape index: {}]
  %s4 = inlined_call_operand.<no memory space> [shape: f32[1,1], index: 4, kind: input, shape index: {}]
  %s5 = inlined_call_operand.hbm [shape: f32[1,128], index: 5, kind: output, shape index: {}]
  %s6 = sld [smem:[#allocation0]]
  $region30: #{tpu_custom_call.1} parent=0
    _
  %s8 = ssub.s32 1, %s6
  %s9 = scalar_select 0, %s8, %s6
  %v10 = vstv %s4
  %11 = vst [vmem:[#allocation2] sm:$0x1] %v10
  $region1: #{tpu_custom_call.1} parent=0
    #allocation3 [shape = 'u8[512]{0}', space=vmem, size = 0x400, scoped, tag = 'output window, operand 0, single buffered']
    #allocation4 [shape = 's32[1]{0}', space=sflag, size = 0x4, scoped, tag = 'scoped memory for tpu_custom_call.1']
    %12 = vsyncpa [#allocation4], 0
    // Predicated region
    $region2: #{tpu_custom_call.1} parent=1 // pred_check
      _
    $region3: #{tpu_custom_call.1} parent=1 // pred_check_branch
      %14 = sbr.rel (0) target = $region5
    $region4: #{tpu_custom_call.1} parent=1 // pred_region
      _
    $region5: #{tpu_custom_call.1} parent=1 // pred_fallthru
      _
    // Predicated region
    $region6: #{tpu_custom_call.1} parent=1 // pred_check
      _
    $region7: #{tpu_custom_call.1} parent=1 // pred_check_branch
      %16 = sbr.rel (0) target = $region9
    $region8: #{tpu_custom_call.1} parent=1 // pred_region
      _
    $region9: #{tpu_custom_call.1} parent=1 // pred_fallthru
      _
    // Predicated region
    $region10: #{tpu_custom_call.1} parent=1 // pred_check
      _
    $region11: #{tpu_custom_call.1} parent=1 // pred_check_branch
      %18 = sbr.rel (0) target = $region13
    $region12: #{tpu_custom_call.1} parent=1 // pred_region
      _
    $region13: #{tpu_custom_call.1} parent=1 // pred_fallthru
      _
    // Predicated region
    $region14: #{tpu_custom_call.1} parent=1 // pred_check
      _
    $region15: #{tpu_custom_call.1} parent=1 // pred_check_branch
      %20 = sbr.rel (0) target = $region17
    $region16: #{tpu_custom_call.1} parent=1 // pred_region
      _
    $region17: #{tpu_custom_call.1} parent=1 // pred_fallthru
      _
    // Predicated region
    $region18: #{tpu_custom_call.1} parent=1 // pred_check
      _
    $region19: #{tpu_custom_call.1} parent=1 // pred_check_branch
      %22 = sbr.rel (0) target = $region21
    $region20: #{tpu_custom_call.1} parent=1 // pred_region
      _
    $region21: #{tpu_custom_call.1} parent=1 // pred_fallthru
      _
    %v23 = vld [vmem:[%s1] sm:$0xff]
    %v24 = vld [vmem:[%s0] sm:$0xff]
    %v25 = vld [vmem:[%s0 + $0x8] sm:$0x1f]
    %v26 = vld [vmem:[%s2] sm:$0xff]
    %28 = vset.pattern.permute.xlu0 0
    %29 = vperm.xlu0 %28, %v26
    %v30 = vpop.permute.xlu0 %29
    %vm32 = vcmask 105472
    %v34 = vsel %vm32, %v23, 0
    %vm36 = vcmask 1044480
    %v38 = vsel %vm36, %v25, 0
    %40 = vmatprep.subr.mxu0 0.0
    %v41 = vand.u32 %v24, 4294901760
    %42 = vmatpush1.msra.mxu0 %v41
    %43 = vmatprep.subr.mxu0 0.0
    %v44 = vand.u32 %v38, 4294901760
    %45 = vmatpush1.msra.mxu0 %v44
    %46 = vmatprep.subr.mxu0 0.0
    %47 = vmatpush1.msra.mxu0 0.0
    %48 = vmatprep.subr.mxu0 0.0
    %49 = vmatpush1.msra.mxu0 0.0
    %50 = vmatprep.subr.mxu0 0.0
    %51 = vmatpush1.msra.mxu0 0.0
    %52 = vmatprep.subr.mxu0 0.0
    %53 = vmatpush1.msra.mxu0 0.0
    %54 = vmatprep.subr.mxu0 0.0
    %55 = vmatpush1.msra.mxu0 0.0
    %56 = vmatprep.subr.mxu0 0.0
    %57 = vmatpush1.msra.mxu0 0.0
    %58 = vmatprep.subr.mxu0 0.0
    %59 = vmatpush1.msra.mxu0 0.0
    %60 = vmatprep.subr.mxu0 0.0
    %61 = vmatpush1.msra.mxu0 0.0
    %62 = vmatprep.subr.mxu0 0.0
    %63 = vmatpush1.msra.mxu0 0.0
    %64 = vmatprep.subr.mxu0 0.0
    %65 = vmatpush1.msra.mxu0 0.0
    %66 = vmatprep.subr.mxu0 0.0
    %67 = vmatpush1.msra.mxu0 0.0
    %68 = vmatprep.subr.mxu0 0.0
    %69 = vmatpush1.msra.mxu0 0.0
    %70 = vmatprep.subr.mxu0 0.0
    %71 = vmatpush1.msra.mxu0 0.0
    %72 = vmatprep.subr.mxu0 0.0
    %73 = vmatpush1.msra.mxu0 0.0
    %74 = vmatprep.subr.mxu0 0.0
    %75 = vmatpush1.msra.mxu0 0.0
    %76 = vmatprep.subr.mxu0 0.0
    %77 = vmatpush1.msra.mxu0 0.0
    %78 = vmatprep.subr.mxu0 0.0
    %79 = vmatpush1.msra.mxu0 0.0
    %80 = vmatprep.subr.mxu0 0.0
    %81 = vmatpush1.msra.mxu0 0.0
    %82 = vmatprep.subr.mxu0 0.0
    %83 = vmatpush1.msra.mxu0 0.0
    %84 = vmatprep.subr.mxu0 0.0
    %85 = vmatpush1.msra.mxu0 0.0
    %86 = vmatprep.subr.mxu0 0.0
    %87 = vmatpush1.msra.mxu0 0.0
    %88 = vmatprep.subr.mxu0 0.0
    %89 = vmatpush1.msra.mxu0 0.0
    %90 = vmatprep.subr.mxu0 0.0
    %91 = vmatpush1.msra.mxu0 0.0
    %92 = vmatprep.subr.mxu0 0.0
    %93 = vmatpush1.msra.mxu0 0.0
    %94 = vmatprep.subr.mxu0 0.0
    %95 = vmatpush1.msra.mxu0 0.0
    %96 = vmatprep.subr.mxu0 0.0
    %97 = vmatpush1.msra.mxu0 0.0
    %98 = vmatprep.subr.mxu0 0.0
    %99 = vmatpush1.msra.mxu0 0.0
    %100 = vmatprep.subr.mxu0 0.0
    %101 = vmatpush1.msra.mxu0 0.0
    %102 = vmatprep.subr.mxu0 0.0
    %103 = vmatpush1.msra.mxu0 0.0
    %104 = vmatprep.subr.mxu0 0.0
    %105 = vmatpush1.msra.mxu0 0.0
    %106 = vmatprep.mubr.f32.mxu0 0.0
    %v107 = vand.u32 %v34, 4294901760
    %v108 = vsub.f32 %v34, %v107
    %v109 = vand.u32 %v108, 4294901760
    %v110 = vsub.f32 %v108, %v109
    %v111 = vand.u32 %v110, 4294901760
    %112 = vmatmul.mubr.f32.gmra.mrb[0].mxu0 %v111
    %v113 = vpop.f32.mrb[0].mxu0
    %v114 = vadd.f32 %v30, %v113
    %v115 = vpop.f32.mrb[0].mxu0
    %116 = vdwg.mxu0
    %117 = vmatprep.subr.mxu0 0.0
    %v118 = vand.u32 %v24, 4294901760
    %v119 = vsub.f32 %v24, %v118
    %v120 = vand.u32 %v119, 4294901760
    %v121 = vsub.f32 %v119, %v120
    %v122 = vand.u32 %v121, 4294901760
    %123 = vmatpush1.msra.mxu0 %v122
    %124 = vmatprep.subr.mxu0 0.0
    %v125 = vand.u32 %v38, 4294901760
    %v126 = vsub.f32 %v38, %v125
    %v127 = vand.u32 %v126, 4294901760
    %v128 = vsub.f32 %v126, %v127
    %v129 = vand.u32 %v128, 4294901760
    %130 = vmatpush1.msra.mxu0 %v129
    %131 = vmatprep.subr.mxu0 0.0
    %132 = vmatpush1.msra.mxu0 0.0
    %133 = vmatprep.subr.mxu0 0.0
    %134 = vmatpush1.msra.mxu0 0.0
    %135 = vmatprep.subr.mxu0 0.0
    %136 = vmatpush1.msra.mxu0 0.0
    %137 = vmatprep.subr.mxu0 0.0
    %138 = vmatpush1.msra.mxu0 0.0
    %139 = vmatprep.subr.mxu0 0.0
    %140 = vmatpush1.msra.mxu0 0.0
    %141 = vmatprep.subr.mxu0 0.0
    %142 = vmatpush1.msra.mxu0 0.0
    %143 = vmatprep.subr.mxu0 0.0
    %144 = vmatpush1.msra.mxu0 0.0
    %145 = vmatprep.subr.mxu0 0.0
    %146 = vmatpush1.msra.mxu0 0.0
    %147 = vmatprep.subr.mxu0 0.0
    %148 = vmatpush1.msra.mxu0 0.0
    %149 = vmatprep.subr.mxu0 0.0
    %150 = vmatpush1.msra.mxu0 0.0
    %151 = vmatprep.subr.mxu0 0.0
    %152 = vmatpush1.msra.mxu0 0.0
    %153 = vmatprep.subr.mxu0 0.0
    %154 = vmatpush1.msra.mxu0 0.0
    %155 = vmatprep.subr.mxu0 0.0
    %156 = vmatpush1.msra.mxu0 0.0
    %157 = vmatprep.subr.mxu0 0.0
    %158 = vmatpush1.msra.mxu0 0.0
    %159 = vmatprep.subr.mxu0 0.0
    %160 = vmatpush1.msra.mxu0 0.0
    %161 = vmatprep.subr.mxu0 0.0
    %162 = vmatpush1.msra.mxu0 0.0
    %163 = vmatprep.subr.mxu0 0.0
    %164 = vmatpush1.msra.mxu0 0.0
    %165 = vmatprep.subr.mxu0 0.0
    %166 = vmatpush1.msra.mxu0 0.0
    %167 = vmatprep.subr.mxu0 0.0
    %168 = vmatpush1.msra.mxu0 0.0
    %169 = vmatprep.subr.mxu0 0.0
    %170 = vmatpush1.msra.mxu0 0.0
    %171 = vmatprep.subr.mxu0 0.0
    %172 = vmatpush1.msra.mxu0 0.0
    %173 = vmatprep.subr.mxu0 0.0
    %174 = vmatpush1.msra.mxu0 0.0
    %175 = vmatprep.subr.mxu0 0.0
    %176 = vmatpush1.msra.mxu0 0.0
    %177 = vmatprep.subr.mxu0 0.0
    %178 = vmatpush1.msra.mxu0 0.0
    %179 = vmatprep.subr.mxu0 0.0
    %180 = vmatpush1.msra.mxu0 0.0
    %181 = vmatprep.subr.mxu0 0.0
    %182 = vmatpush1.msra.mxu0 0.0
    %183 = vmatprep.subr.mxu0 0.0
    %184 = vmatpush1.msra.mxu0 0.0
    %185 = vmatprep.subr.mxu0 0.0
    %186 = vmatpush1.msra.mxu0 0.0
    %187 = vmatprep.subr.mxu0 0.0
    %188 = vmatpush1.msra.mxu0 0.0
    %189 = vmatprep.subr.mxu0 0.0
    %190 = vmatpush1.msra.mxu0 0.0
    %191 = vmatprep.mubr.f32.mxu0 0.0
    %v192 = vand.u32 %v34, 4294901760
    %193 = vmatmul.mubr.f32.gmra.mrb[0].mxu0 %v192
    %v194 = vpop.f32.mrb[0].mxu0
    %v195 = vadd.f32 %v114, %v194
    %v196 = vpop.f32.mrb[0].mxu0
    %197 = vdwg.mxu0
    %198 = vmatprep.subr.mxu0 0.0
    %v199 = vand.u32 %v24, 4294901760
    %v200 = vsub.f32 %v24, %v199
    %201 = vmatpush1.msra.mxu0 %v200
    %202 = vmatprep.subr.mxu0 0.0
    %v203 = vand.u32 %v38, 4294901760
    %v204 = vsub.f32 %v38, %v203
    %205 = vmatpush1.msra.mxu0 %v204
    %206 = vmatprep.subr.mxu0 0.0
    %207 = vmatpush1.msra.mxu0 0.0
    %208 = vmatprep.subr.mxu0 0.0
    %209 = vmatpush1.msra.mxu0 0.0
    %210 = vmatprep.subr.mxu0 0.0
    %211 = vmatpush1.msra.mxu0 0.0
    %212 = vmatprep.subr.mxu0 0.0
    %213 = vmatpush1.msra.mxu0 0.0
    %214 = vmatprep.subr.mxu0 0.0
    %215 = vmatpush1.msra.mxu0 0.0
    %216 = vmatprep.subr.mxu0 0.0
    %217 = vmatpush1.msra.mxu0 0.0
    %218 = vmatprep.subr.mxu0 0.0
    %219 = vmatpush1.msra.mxu0 0.0
    %220 = vmatprep.subr.mxu0 0.0
    %221 = vmatpush1.msra.mxu0 0.0
    %222 = vmatprep.subr.mxu0 0.0
    %223 = vmatpush1.msra.mxu0 0.0
    %224 = vmatprep.subr.mxu0 0.0
    %225 = vmatpush1.msra.mxu0 0.0
    %226 = vmatprep.subr.mxu0 0.0
    %227 = vmatpush1.msra.mxu0 0.0
    %228 = vmatprep.subr.mxu0 0.0
    %229 = vmatpush1.msra.mxu0 0.0
    %230 = vmatprep.subr.mxu0 0.0
    %231 = vmatpush1.msra.mxu0 0.0
    %232 = vmatprep.subr.mxu0 0.0
    %233 = vmatpush1.msra.mxu0 0.0
    %234 = vmatprep.subr.mxu0 0.0
    %235 = vmatpush1.msra.mxu0 0.0
    %236 = vmatprep.subr.mxu0 0.0
    %237 = vmatpush1.msra.mxu0 0.0
    %238 = vmatprep.subr.mxu0 0.0
    %239 = vmatpush1.msra.mxu0 0.0
    %240 = vmatprep.subr.mxu0 0.0
    %241 = vmatpush1.msra.mxu0 0.0
    %242 = vmatprep.subr.mxu0 0.0
    %243 = vmatpush1.msra.mxu0 0.0
    %244 = vmatprep.subr.mxu0 0.0
    %245 = vmatpush1.msra.mxu0 0.0
    %246 = vmatprep.subr.mxu0 0.0
    %247 = vmatpush1.msra.mxu0 0.0
    %248 = vmatprep.subr.mxu0 0.0
    %249 = vmatpush1.msra.mxu0 0.0
    %250 = vmatprep.subr.mxu0 0.0
    %251 = vmatpush1.msra.mxu0 0.0
    %252 = vmatprep.subr.mxu0 0.0
    %253 = vmatpush1.msra.mxu0 0.0
    %254 = vmatprep.subr.mxu0 0.0
    %255 = vmatpush1.msra.mxu0 0.0
    %256 = vmatprep.subr.mxu0 0.0
    %257 = vmatpush1.msra.mxu0 0.0
    %258 = vmatprep.subr.mxu0 0.0
    %259 = vmatpush1.msra.mxu0 0.0
    %260 = vmatprep.subr.mxu0 0.0
    %261 = vmatpush1.msra.mxu0 0.0
    %262 = vmatprep.subr.mxu0 0.0
    %263 = vmatpush1.msra.mxu0 0.0
    %264 = vmatprep.subr.mxu0 0.0
    %265 = vmatpush1.msra.mxu0 0.0
    %266 = vmatprep.mubr.f32.mxu0 0.0
    %v267 = vand.u32 %v34, 4294901760
    %v268 = vsub.f32 %v34, %v267
    %269 = vmatmul.mubr.f32.gmra.mrb[0].mxu0 %v268
    %v270 = vpop.f32.mrb[0].mxu0
    %v271 = vadd.f32 %v195, %v270
    %v272 = vpop.f32.mrb[0].mxu0
    %273 = vdwg.mxu0
    %274 = vmatprep.subr.mxu0 0.0
    %v275 = vand.u32 %v24, 4294901760
    %276 = vmatpush1.msra.mxu0 %v275
    %277 = vmatprep.subr.mxu0 0.0
    %v278 = vand.u32 %v38, 4294901760
    %279 = vmatpush1.msra.mxu0 %v278
    %280 = vmatprep.subr.mxu0 0.0
    %281 = vmatpush1.msra.mxu0 0.0
    %282 = vmatprep.subr.mxu0 0.0
    %283 = vmatpush1.msra.mxu0 0.0
    %284 = vmatprep.subr.mxu0 0.0
    %285 = vmatpush1.msra.mxu0 0.0
    %286 = vmatprep.subr.mxu0 0.0
    %287 = vmatpush1.msra.mxu0 0.0
    %288 = vmatprep.subr.mxu0 0.0
    %289 = vmatpush1.msra.mxu0 0.0
    %290 = vmatprep.subr.mxu0 0.0
    %291 = vmatpush1.msra.mxu0 0.0
    %292 = vmatprep.subr.mxu0 0.0
    %293 = vmatpush1.msra.mxu0 0.0
    %294 = vmatprep.subr.mxu0 0.0
    %295 = vmatpush1.msra.mxu0 0.0
    %296 = vmatprep.subr.mxu0 0.0
    %297 = vmatpush1.msra.mxu0 0.0
    %298 = vmatprep.subr.mxu0 0.0
    %299 = vmatpush1.msra.mxu0 0.0
    %300 = vmatprep.subr.mxu0 0.0
    %301 = vmatpush1.msra.mxu0 0.0
    %302 = vmatprep.subr.mxu0 0.0
    %303 = vmatpush1.msra.mxu0 0.0
    %304 = vmatprep.subr.mxu0 0.0
    %305 = vmatpush1.msra.mxu0 0.0
    %306 = vmatprep.subr.mxu0 0.0
    %307 = vmatpush1.msra.mxu0 0.0
    %308 = vmatprep.subr.mxu0 0.0
    %309 = vmatpush1.msra.mxu0 0.0
    %310 = vmatprep.subr.mxu0 0.0
    %311 = vmatpush1.msra.mxu0 0.0
    %312 = vmatprep.subr.mxu0 0.0
    %313 = vmatpush1.msra.mxu0 0.0
    %314 = vmatprep.subr.mxu0 0.0
    %315 = vmatpush1.msra.mxu0 0.0
    %316 = vmatprep.subr.mxu0 0.0
    %317 = vmatpush1.msra.mxu0 0.0
    %318 = vmatprep.subr.mxu0 0.0
    %319 = vmatpush1.msra.mxu0 0.0
    %320 = vmatprep.subr.mxu0 0.0
    %321 = vmatpush1.msra.mxu0 0.0
    %322 = vmatprep.subr.mxu0 0.0
    %323 = vmatpush1.msra.mxu0 0.0
    %324 = vmatprep.subr.mxu0 0.0
    %325 = vmatpush1.msra.mxu0 0.0
    %326 = vmatprep.subr.mxu0 0.0
    %327 = vmatpush1.msra.mxu0 0.0
    %328 = vmatprep.subr.mxu0 0.0
    %329 = vmatpush1.msra.mxu0 0.0
    %330 = vmatprep.subr.mxu0 0.0
    %331 = vmatpush1.msra.mxu0 0.0
    %332 = vmatprep.subr.mxu0 0.0
    %333 = vmatpush1.msra.mxu0 0.0
    %334 = vmatprep.subr.mxu0 0.0
    %335 = vmatpush1.msra.mxu0 0.0
    %336 = vmatprep.subr.mxu0 0.0
    %337 = vmatpush1.msra.mxu0 0.0
    %338 = vmatprep.subr.mxu0 0.0
    %339 = vmatpush1.msra.mxu0 0.0
    %340 = vmatprep.mubr.f32.mxu0 0.0
    %v341 = vand.u32 %v34, 4294901760
    %v342 = vsub.f32 %v34, %v341
    %v343 = vand.u32 %v342, 4294901760
    %344 = vmatmul.mubr.f32.gmra.mrb[0].mxu0 %v343
    %v345 = vpop.f32.mrb[0].mxu0
    %v346 = vadd.f32 %v271, %v345
    %v347 = vpop.f32.mrb[0].mxu0
    %348 = vdwg.mxu0
    %349 = vmatprep.subr.mxu0 0.0
    %v350 = vand.u32 %v24, 4294901760
    %v351 = vsub.f32 %v24, %v350
    %v352 = vand.u32 %v351, 4294901760
    %353 = vmatpush1.msra.mxu0 %v352
    %354 = vmatprep.subr.mxu0 0.0
    %v355 = vand.u32 %v38, 4294901760
    %v356 = vsub.f32 %v38, %v355
    %v357 = vand.u32 %v356, 4294901760
    %358 = vmatpush1.msra.mxu0 %v357
    %359 = vmatprep.subr.mxu0 0.0
    %360 = vmatpush1.msra.mxu0 0.0
    %361 = vmatprep.subr.mxu0 0.0
    %362 = vmatpush1.msra.mxu0 0.0
    %363 = vmatprep.subr.mxu0 0.0
    %364 = vmatpush1.msra.mxu0 0.0
    %365 = vmatprep.subr.mxu0 0.0
    %366 = vmatpush1.msra.mxu0 0.0
    %367 = vmatprep.subr.mxu0 0.0
    %368 = vmatpush1.msra.mxu0 0.0
    %369 = vmatprep.subr.mxu0 0.0
    %370 = vmatpush1.msra.mxu0 0.0
    %371 = vmatprep.subr.mxu0 0.0
    %372 = vmatpush1.msra.mxu0 0.0
    %373 = vmatprep.subr.mxu0 0.0
    %374 = vmatpush1.msra.mxu0 0.0
    %375 = vmatprep.subr.mxu0 0.0
    %376 = vmatpush1.msra.mxu0 0.0
    %377 = vmatprep.subr.mxu0 0.0
    %378 = vmatpush1.msra.mxu0 0.0
    %379 = vmatprep.subr.mxu0 0.0
    %380 = vmatpush1.msra.mxu0 0.0
    %381 = vmatprep.subr.mxu0 0.0
    %382 = vmatpush1.msra.mxu0 0.0
    %383 = vmatprep.subr.mxu0 0.0
    %384 = vmatpush1.msra.mxu0 0.0
    %385 = vmatprep.subr.mxu0 0.0
    %386 = vmatpush1.msra.mxu0 0.0
    %387 = vmatprep.subr.mxu0 0.0
    %388 = vmatpush1.msra.mxu0 0.0
    %389 = vmatprep.subr.mxu0 0.0
    %390 = vmatpush1.msra.mxu0 0.0
    %391 = vmatprep.subr.mxu0 0.0
    %392 = vmatpush1.msra.mxu0 0.0
    %393 = vmatprep.subr.mxu0 0.0
    %394 = vmatpush1.msra.mxu0 0.0
    %395 = vmatprep.subr.mxu0 0.0
    %396 = vmatpush1.msra.mxu0 0.0
    %397 = vmatprep.subr.mxu0 0.0
    %398 = vmatpush1.msra.mxu0 0.0
    %399 = vmatprep.subr.mxu0 0.0
    %400 = vmatpush1.msra.mxu0 0.0
    %401 = vmatprep.subr.mxu0 0.0
    %402 = vmatpush1.msra.mxu0 0.0
    %403 = vmatprep.subr.mxu0 0.0
    %404 = vmatpush1.msra.mxu0 0.0
    %405 = vmatprep.subr.mxu0 0.0
    %406 = vmatpush1.msra.mxu0 0.0
    %407 = vmatprep.subr.mxu0 0.0
    %408 = vmatpush1.msra.mxu0 0.0
    %409 = vmatprep.subr.mxu0 0.0
    %410 = vmatpush1.msra.mxu0 0.0
    %411 = vmatprep.subr.mxu0 0.0
    %412 = vmatpush1.msra.mxu0 0.0
    %413 = vmatprep.subr.mxu0 0.0
    %414 = vmatpush1.msra.mxu0 0.0
    %415 = vmatprep.subr.mxu0 0.0
    %416 = vmatpush1.msra.mxu0 0.0
    %417 = vmatprep.subr.mxu0 0.0
    %418 = vmatpush1.msra.mxu0 0.0
    %419 = vmatprep.mubr.f32.mxu0 0.0
    %v420 = vand.u32 %v34, 4294901760
    %421 = vmatmul.mubr.f32.gmra.mrb[0].mxu0 %v420
    %v422 = vpop.f32.mrb[0].mxu0
    %v423 = vadd.f32 %v346, %v422
    %v424 = vpop.f32.mrb[0].mxu0
    %425 = vdwg.mxu0
    %426 = vmatprep.subr.mxu0 0.0
    %v427 = vand.u32 %v24, 4294901760
    %428 = vmatpush1.msra.mxu0 %v427
    %429 = vmatprep.subr.mxu0 0.0
    %v430 = vand.u32 %v38, 4294901760
    %431 = vmatpush1.msra.mxu0 %v430
    %432 = vmatprep.subr.mxu0 0.0
    %433 = vmatpush1.msra.mxu0 0.0
    %434 = vmatprep.subr.mxu0 0.0
    %435 = vmatpush1.msra.mxu0 0.0
    %436 = vmatprep.subr.mxu0 0.0
    %437 = vmatpush1.msra.mxu0 0.0
    %438 = vmatprep.subr.mxu0 0.0
    %439 = vmatpush1.msra.mxu0 0.0
    %440 = vmatprep.subr.mxu0 0.0
    %441 = vmatpush1.msra.mxu0 0.0
    %442 = vmatprep.subr.mxu0 0.0
    %443 = vmatpush1.msra.mxu0 0.0
    %444 = vmatprep.subr.mxu0 0.0
    %445 = vmatpush1.msra.mxu0 0.0
    %446 = vmatprep.subr.mxu0 0.0
    %447 = vmatpush1.msra.mxu0 0.0
    %448 = vmatprep.subr.mxu0 0.0
    %449 = vmatpush1.msra.mxu0 0.0
    %450 = vmatprep.subr.mxu0 0.0
    %451 = vmatpush1.msra.mxu0 0.0
    %452 = vmatprep.subr.mxu0 0.0
    %453 = vmatpush1.msra.mxu0 0.0
    %454 = vmatprep.subr.mxu0 0.0
    %455 = vmatpush1.msra.mxu0 0.0
    %456 = vmatprep.subr.mxu0 0.0
    %457 = vmatpush1.msra.mxu0 0.0
    %458 = vmatprep.subr.mxu0 0.0
    %459 = vmatpush1.msra.mxu0 0.0
    %460 = vmatprep.subr.mxu0 0.0
    %461 = vmatpush1.msra.mxu0 0.0
    %462 = vmatprep.subr.mxu0 0.0
    %463 = vmatpush1.msra.mxu0 0.0
    %464 = vmatprep.subr.mxu0 0.0
    %465 = vmatpush1.msra.mxu0 0.0
    %466 = vmatprep.subr.mxu0 0.0
    %467 = vmatpush1.msra.mxu0 0.0
    %468 = vmatprep.subr.mxu0 0.0
    %469 = vmatpush1.msra.mxu0 0.0
    %470 = vmatprep.subr.mxu0 0.0
    %471 = vmatpush1.msra.mxu0 0.0
    %472 = vmatprep.subr.mxu0 0.0
    %473 = vmatpush1.msra.mxu0 0.0
    %474 = vmatprep.subr.mxu0 0.0
    %475 = vmatpush1.msra.mxu0 0.0
    %476 = vmatprep.subr.mxu0 0.0
    %477 = vmatpush1.msra.mxu0 0.0
    %478 = vmatprep.subr.mxu0 0.0
    %479 = vmatpush1.msra.mxu0 0.0
    %480 = vmatprep.subr.mxu0 0.0
    %481 = vmatpush1.msra.mxu0 0.0
    %482 = vmatprep.subr.mxu0 0.0
    %483 = vmatpush1.msra.mxu0 0.0
    %484 = vmatprep.subr.mxu0 0.0
    %485 = vmatpush1.msra.mxu0 0.0
    %486 = vmatprep.subr.mxu0 0.0
    %487 = vmatpush1.msra.mxu0 0.0
    %488 = vmatprep.subr.mxu0 0.0
    %489 = vmatpush1.msra.mxu0 0.0
    %490 = vmatprep.subr.mxu0 0.0
    %491 = vmatpush1.msra.mxu0 0.0
    %492 = vmatprep.mubr.f32.mxu0 0.0
    %v493 = vand.u32 %v34, 4294901760
    %494 = vmatmul.mubr.f32.gmra.mrb[0].mxu0 %v493
    %v495 = vpop.f32.mrb[0].mxu0
    %v496 = vadd.f32 %v423, %v495
    %v497 = vpop.f32.mrb[0].mxu0
    %498 = vdwg.mxu0
    %v499 = vmax.f32 %v496, 0.0
    %v500 = vld [vmem:[%s3] sm:$0xff]
    %502 = vset.pattern.permute.xlu0 0
    %503 = vperm.xlu0 %502, %v500
    %v504 = vpop.permute.xlu0 %503
    %v506 = vmul.f32 %v499, %v504
    %v507 = vrot.slane %v506, 4
    %v508 = vadd.f32 %v506, %v507
    %v509 = vrot.slane %v508, 2
    %v510 = vadd.f32 %v508, %v509
    %v511 = vrot.slane %v510, 1
    %v512 = vadd.f32 %v510, %v511
    %v513 = vld [vmem:[#allocation2] sm:$0x1]
    %515 = vset.pattern.permute.xlu0 0
    %516 = vperm.xlu0 %515, %v513
    %v517 = vpop.permute.xlu0 %516
    %v519 = vlaneseq
    %v520 = vshrl.u32 %v519, 7
    %v521 = vsub.s32 0, %v520
    %v522 = vrot.slane %v517, %v521
    %v523 = vadd.f32 %v512, %v522
    %524 = vst [vmem:[#allocation3] sm:$0x1] %v523
    // Predicated region
    $region22: #{tpu_custom_call.1} parent=1 // pred_check
      _
    $region23: #{tpu_custom_call.1} parent=1 // pred_check_branch
      %526 = sbr.rel (0) target = $region25
    $region24: #{tpu_custom_call.1} parent=1 // pred_region
      %s528 = ssub.s32 16, 16
      %529 = vsyncadd [#allocation4], %s528
      %s531 = sshll.u32 [#allocation3], 4
      %s532 = int_to_ptr.vmem [resolvable:$true] %s531
      %534 = dma.vmem_to_hbm [thread:$0]  %s532, 16, %s5, [#allocation4]
    $region25: #{tpu_custom_call.1} parent=1 // pred_fallthru
      _
    // Predicated region
    $region26: #{tpu_custom_call.1} parent=1 // pred_check
      _
    $region27: #{tpu_custom_call.1} parent=1 // pred_check_branch
      %536 = sbr.rel (0) target = $region29
    $region28: #{tpu_custom_call.1} parent=1 // pred_region
      %537 = dma.done [#allocation4], 16
    $region29: #{tpu_custom_call.1} parent=1 // pred_fallthru
      _
    %538 = vsyncpa [#allocation4], 1

</llo_original>
